<compile_context>
chip_gen: v7x
topology: tpu7x:2x2x1
jax: 0.10.0
libtpu: 0.0.40
codegen_flags: <defaults>
</compile_context>

<pallas_src>
import math
import jax
import jax.numpy as jnp
from jax.experimental import pallas as pl
from jax.experimental.pallas import tpu as pltpu


def _mlp_kernel(xT_ref, w1_ref, b1_ref, w2_ref, b2_ref, oT_ref):
    # xT: (C_in, TB)  -- batch on lanes (lane-dense)
    # w1: (8, C_in), b1: (8, 1), w2: (2, 8), b2: (2, 1), oT: (2, TB)
    x = xT_ref[...]
    h = jnp.dot(w1_ref[...], x, preferred_element_type=jnp.float32)   # (8, TB)
    h = jnp.maximum(h + b1_ref[...], 0.0)                             # ReLU
    y = jnp.dot(w2_ref[...], h, preferred_element_type=jnp.float32)   # (2, TB)
    oT_ref[...] = (y + b2_ref[...]).astype(oT_ref.dtype)


def base_model_disp_onlytracks(x, w1, b1, w2, b2, *, tb=2048):
    """Forward pass.

    x : (B, C_in) float32
    w1: (8, C_in), b1: (8,)   -- PyTorch Linear layout (out_features, in_features)
    w2: (2, 8),   b2: (2,)
    returns (B, 2) float32
    """
    B, c_in = x.shape
    h_dim = w1.shape[0]
    out_dim = w2.shape[0]

    assert tb % 128 == 0, "batch tile must be a multiple of 128 lanes"
    n_tiles = pl.cdiv(B, tb)
    Bp = n_tiles * tb

    # Lane-dense transposed activations; zero-pad batch to a full tile multiple.
    xT = x.astype(jnp.float32).T                       # (C_in, B)
    if Bp != B:
        xT = jnp.pad(xT, ((0, 0), (0, Bp - B)))

    b1c = b1.reshape(h_dim, 1).astype(jnp.float32)
    b2c = b2.reshape(out_dim, 1).astype(jnp.float32)
    w1f = w1.astype(jnp.float32)
    w2f = w2.astype(jnp.float32)

    flops = 2 * B * (c_in * h_dim + h_dim * out_dim)
    bytes_accessed = 4 * (B * c_in + B * out_dim
                          + w1f.size + b1c.size + w2f.size + b2c.size)

    yT = pl.pallas_call(
        _mlp_kernel,
        out_shape=jax.ShapeDtypeStruct((out_dim, Bp), jnp.float32),
        grid=(n_tiles,),
        in_specs=[
            pl.BlockSpec((c_in, tb), lambda i: (0, i)),        # x tile (batch on lanes)
            pl.BlockSpec((h_dim, c_in), lambda i: (0, 0)),     # w1 resident
            pl.BlockSpec((h_dim, 1), lambda i: (0, 0)),        # b1 resident
            pl.BlockSpec((out_dim, h_dim), lambda i: (0, 0)),  # w2 resident
            pl.BlockSpec((out_dim, 1), lambda i: (0, 0)),      # b2 resident
        ],
        out_specs=pl.BlockSpec((out_dim, tb), lambda i: (0, i)),
        compiler_params=pltpu.CompilerParams(
            dimension_semantics=("parallel",)),
        cost_estimate=pl.CostEstimate(
            flops=flops, transcendentals=0, bytes_accessed=bytes_accessed),
    )(xT, w1f, b1c, w2f, b2c)

    # Slice off padded batch columns and return (B, 2).
    return yT[:, :B].T


def init_params(key, num_tracks=2, with_windspeed=False):
    """Mirror the module's init_weights():
       fc1 (idx==1 Linear): xavier_normal gain=1, bias ~ N(0, 1)
       fc2: xavier_normal gain=sqrt(2), bias ~ N(0, 1).
       Weights stored PyTorch-style as (out_features, in_features)."""
    in_channels = num_tracks * 2 + (5 if with_windspeed else 0)
    k1, k2, k3, k4 = jax.random.split(key, 4)

    def xavier_normal(k, fan_out, fan_in, gain):
        std = gain * math.sqrt(2.0 / (fan_in + fan_out))
        return (std * jax.random.normal(k, (fan_out, fan_in))).astype(jnp.float32)

    w1 = xavier_normal(k1, 8, in_channels, gain=1.0)
    b1 = jax.random.normal(k2, (8,)).astype(jnp.float32)
    w2 = xavier_normal(k3, 2, 8, gain=math.sqrt(2.0))
    b2 = jax.random.normal(k4, (2,)).astype(jnp.float32)
    return w1, b1, w2, b2


if __name__ == "__main__":
    key = jax.random.PRNGKey(0)
    kx, kp = jax.random.split(key)

    B = 300                      # deliberately not a multiple of the tile
    num_tracks = 2
    in_channels = num_tracks * 2

    x = jax.random.normal(kx, (B, in_channels), dtype=jnp.float32)
    w1, b1, w2, b2 = init_params(kp, num_tracks=num_tracks)

    out = base_model_disp_onlytracks(x, w1, b1, w2, b2, tb=256)
    out = jax.block_until_ready(out)

    # Pure-JAX reference with identical semantics to the PyTorch forward.
    ref = jnp.maximum(x @ w1.T + b1, 0.0) @ w2.T + b2
    assert out.shape == (B, 2)
    assert jnp.allclose(out, ref, atol=1e-5, rtol=1e-5)

    print("KERNEL_OK")
</pallas_src>

<mosaic_0001>
module attributes {stable_mosaic.version = 11 : i64} {
  func.func @_mlp_kernel(%arg0: i32, %arg1: memref<4x256xf32, #tpu.memory_space<vmem>>, %arg2: memref<8x4xf32, #tpu.memory_space<vmem>>, %arg3: memref<8x1xf32, #tpu.memory_space<vmem>>, %arg4: memref<2x8xf32, #tpu.memory_space<vmem>>, %arg5: memref<2x1xf32, #tpu.memory_space<vmem>>, %arg6: memref<2x256xf32, #tpu.memory_space<vmem>>) attributes {dimension_semantics = [#tpu.dimension_semantics<parallel>], iteration_bounds = array<i64: 2>, scalar_prefetch = 0 : i64, scratch_operands = 0 : i64, tpu.core_type = #tpu.core_type<tc>, window_params = [{transform_indices = @transform_0, window_bounds = array<i64: 4, 256>}, {pipeline_mode = #tpu.pipeline_mode<synchronous>, transform_indices = @transform_1, window_bounds = array<i64: 8, 4>}, {pipeline_mode = #tpu.pipeline_mode<synchronous>, transform_indices = @transform_2, window_bounds = array<i64: 8, 1>}, {pipeline_mode = #tpu.pipeline_mode<synchronous>, transform_indices = @transform_3, window_bounds = array<i64: 2, 8>}, {pipeline_mode = #tpu.pipeline_mode<synchronous>, transform_indices = @transform_4, window_bounds = array<i64: 2, 1>}, {transform_indices = @transform_5, window_bounds = array<i64: 2, 256>}]} {
    %c0 = arith.constant 0 : index
    %c0_0 = arith.constant 0 : index
    %0 = vector.load %arg1[%c0, %c0_0] : memref<4x256xf32, #tpu.memory_space<vmem>>, vector<4x256xf32>
    %c0_1 = arith.constant 0 : index
    %c0_2 = arith.constant 0 : index
    %1 = vector.load %arg2[%c0_1, %c0_2] : memref<8x4xf32, #tpu.memory_space<vmem>>, vector<8x4xf32>
    %cst = arith.constant dense<0.000000e+00> : vector<8x256xf32>
    %2 = tpu.matmul %1, %0, %cst {dimension_numbers = #tpu.dot_dimension_numbers<[1], [0], [0], [1], [0, 0, 1, 1], [], []>} : vector<8x4xf32>, vector<4x256xf32>, vector<8x256xf32> -> vector<8x256xf32>
    %c0_3 = arith.constant 0 : index
    %c0_4 = arith.constant 0 : index
    %3 = vector.load %arg3[%c0_3, %c0_4] : memref<8x1xf32, #tpu.memory_space<vmem>>, vector<8x1xf32>
    %4 = vector.broadcast %3 : vector<8x1xf32> to vector<8x256xf32>
    %5 = arith.addf %2, %4 : vector<8x256xf32>
    %cst_5 = arith.constant 0.000000e+00 : f32
    %6 = vector.broadcast %cst_5 : f32 to vector<8x256xf32>
    %7 = arith.maximumf %5, %6 : vector<8x256xf32>
    %c0_6 = arith.constant 0 : index
    %c0_7 = arith.constant 0 : index
    %8 = vector.load %arg4[%c0_6, %c0_7] : memref<2x8xf32, #tpu.memory_space<vmem>>, vector<2x8xf32>
    %cst_8 = arith.constant dense<0.000000e+00> : vector<2x256xf32>
    %9 = tpu.matmul %8, %7, %cst_8 {dimension_numbers = #tpu.dot_dimension_numbers<[1], [0], [0], [1], [0, 0, 1, 1], [], []>} : vector<2x8xf32>, vector<8x256xf32>, vector<2x256xf32> -> vector<2x256xf32>
    %c0_9 = arith.constant 0 : index
    %c0_10 = arith.constant 0 : index
    %10 = vector.load %arg5[%c0_9, %c0_10] : memref<2x1xf32, #tpu.memory_space<vmem>>, vector<2x1xf32>
    %11 = vector.broadcast %10 : vector<2x1xf32> to vector<2x256xf32>
    %12 = arith.addf %9, %11 : vector<2x256xf32>
    %c0_11 = arith.constant 0 : index
    %c0_12 = arith.constant 0 : index
    %13 = vector.load %arg6[%c0_11, %c0_12] : memref<2x256xf32, #tpu.memory_space<vmem>>, vector<2x256xf32>
    tpu.vector_store %arg6[%c0_11, %c0_12], %12 {strides = array<i32>} : memref<2x256xf32, #tpu.memory_space<vmem>>, vector<2x256xf32>,
    return
  }
  func.func @transform_0(%arg0: i32) -> (i32, i32) {
    %c0_i32 = arith.constant 0 : i32
    %c0_i32_0 = arith.constant 0 : i32
    return %c0_i32, %arg0 : i32, i32
  }
  func.func @transform_1(%arg0: i32) -> (i32, i32) {
    %c0_i32 = arith.constant 0 : i32
    %c0_i32_0 = arith.constant 0 : i32
    %c0_i32_1 = arith.constant 0 : i32
    return %c0_i32, %c0_i32_0 : i32, i32
  }
  func.func @transform_2(%arg0: i32) -> (i32, i32) {
    %c0_i32 = arith.constant 0 : i32
    %c0_i32_0 = arith.constant 0 : i32
    %c0_i32_1 = arith.constant 0 : i32
    return %c0_i32, %c0_i32_0 : i32, i32
  }
  func.func @transform_3(%arg0: i32) -> (i32, i32) {
    %c0_i32 = arith.constant 0 : i32
    %c0_i32_0 = arith.constant 0 : i32
    %c0_i32_1 = arith.constant 0 : i32
    return %c0_i32, %c0_i32_0 : i32, i32
  }
  func.func @transform_4(%arg0: i32) -> (i32, i32) {
    %c0_i32 = arith.constant 0 : i32
    %c0_i32_0 = arith.constant 0 : i32
    %c0_i32_1 = arith.constant 0 : i32
    return %c0_i32, %c0_i32_0 : i32, i32
  }
  func.func @transform_5(%arg0: i32) -> (i32, i32) {
    %c0_i32 = arith.constant 0 : i32
    %c0_i32_0 = arith.constant 0 : i32
    return %c0_i32, %arg0 : i32, i32
  }
}

</mosaic_0001>

<llo_original>
// kernel: tpu_custom_call.1
$region0: #{tpu_custom_call.1}
  #allocation0 [shape = 'u32[]', space=smem, size = 0x4, offset = 0x4, fixed_abs, tag = 'smem constant byte address 0x4 - core index']
  #allocation1 [shape = 'u32[144,128]{1,0:T(1,128)}', space=vmem, size = 0x12000, scoped, tag = 'internal scratch']
  %s0 = inlined_call_operand.vmem [shape: f32[4,512], index: 0, kind: input, shape index: {}]
  %s1 = inlined_call_operand.vmem [shape: f32[8,4], index: 1, kind: input, shape index: {}]
  %s2 = inlined_call_operand.vmem [shape: f32[8,1], index: 2, kind: input, shape index: {}]
  %s3 = inlined_call_operand.vmem [shape: f32[2,8], index: 3, kind: input, shape index: {}]
  %s4 = inlined_call_operand.vmem [shape: f32[2,1], index: 4, kind: input, shape index: {}]
  %s5 = inlined_call_operand.hbm [shape: f32[2,512], index: 5, kind: output, shape index: {}]
  %s6 = sld [smem:[#allocation0]]
  $region53: #{tpu_custom_call.1} parent=0
    _
  %s8 = ssub.s32 1, %s6
  %s9 = scalar_select 0, %s8, %s6
  $region1: #{tpu_custom_call.1} parent=0
    #allocation2 [shape = 'u8[4096]{0}', space=vmem, size = 0x1000, scoped, tag = 'output window, operand 0']
    #allocation3 [shape = 's32[2]{0}', space=sflag, size = 0x8, scoped, tag = 'scoped memory for tpu_custom_call.1']
    %10 = vsyncpa [#allocation3], 0
    %s11 = scalar_lea.sflag [#allocation3], 1
    %12 = vsyncpa %s11, 0
    loop: start=0, step=1, limit=4
    $region2: #{tpu_custom_call.1} parent=1 // loop_pre_header
      _
    $region3: #{tpu_custom_call.1} parent=1 // loop_header
      %s14 = sphi 0, %s18
      %p15 = scmp.ge.s32.totalorder %s14, 4
      %s24 = sphi 0, %s26
      %s27 = sphi 0, %s24
      %s28 = sphi 0, %s27
      %s44 = sphi 0, %s28
      %s48 = sphi 0, %s48
      %s50 = sphi 0, %s48
      %s51 = sphi 0, %s50
      %s65 = sphi 0, %s51
      %s69 = sphi 0, %s69
      %s71 = sphi 0, %s69
      %s72 = sphi 0, %s71
      %s86 = sphi 0, %s72
      %s90 = sphi 0, %s90
      %s92 = sphi 0, %s90
      %s93 = sphi 0, %s92
      %s107 = sphi 0, %s93
      %s111 = sphi 0, %s111
      %s113 = sphi 0, %s111
      %s114 = sphi 0, %s113
      %s128 = sphi 0, %s114
      %s134 = sphi 0, %s136
      %s137 = sphi 0, %s134
      %s138 = sphi 0, %s137
      %s154 = sphi 0, %s138
    $region4: #{tpu_custom_call.1} parent=1 // loop_header_branch
      %17 = sbr.rel (%p15) target = $region8
    $region5: #{tpu_custom_call.1} parent=1 // loop_body
      %s19 = ssub.s32 %s14, 1
      %s20 = ssub.s32 %s14, 2
      %s21 = sadd.s32 %s14, 1
      %s22 = ssub.s32 %s14, %s21
      %p23 = scmp.eq.s32.totalorder %s22, 0
      %s25 = sadd.s32 %s24, 1
      %s26 = scalar_select %p23, %s24, %s25
      %p29 = pneg %p23
      %p30 = scmp.eq.s32.totalorder %s14, 1
      %p31 = por %p29, %p30
      %p32 = scmp.ne.s32.totalorder %s24, %s27
      %p33 = scmp.eq.s32.totalorder %s14, 0
      %p34 = por %p32, %p33
      %p35 = scmp.ne.s32.totalorder %s24, %s27
      %p36 = scmp.eq.s32.totalorder %s19, 1
      %p37 = por %p35, %p36
      %p38 = scmp.ne.s32.totalorder %s27, %s28
      %p39 = scmp.eq.s32.totalorder %s19, 0
      %p40 = por %p38, %p39
      %p41 = scmp.ne.s32.totalorder %s27, %s28
      %p42 = scmp.eq.s32.totalorder %s20, 1
      %p43 = por %p41, %p42
      %p45 = scmp.ne.s32.totalorder %s28, %s44
      %p46 = scmp.eq.s32.totalorder %s20, 0
      %p47 = por %p45, %p46
      %s49 = sadd.s32 %s48, 1
      %p52 = scmp.eq.s32.totalorder %s14, 1
      %p53 = scmp.ne.s32.totalorder %s48, %s50
      %p54 = scmp.eq.s32.totalorder %s14, 0
      %p55 = por %p53, %p54
      %p56 = scmp.ne.s32.totalorder %s48, %s50
      %p57 = scmp.eq.s32.totalorder %s19, 1
      %p58 = por %p56, %p57
      %p59 = scmp.ne.s32.totalorder %s50, %s51
      %p60 = scmp.eq.s32.totalorder %s19, 0
      %p61 = por %p59, %p60
      %p62 = scmp.ne.s32.totalorder %s50, %s51
      %p63 = scmp.eq.s32.totalorder %s20, 1
      %p64 = por %p62, %p63
      %p66 = scmp.ne.s32.totalorder %s51, %s65
      %p67 = scmp.eq.s32.totalorder %s20, 0
      %p68 = por %p66, %p67
      %s70 = sadd.s32 %s69, 1
      %p73 = scmp.eq.s32.totalorder %s14, 1
      %p74 = scmp.ne.s32.totalorder %s69, %s71
      %p75 = scmp.eq.s32.totalorder %s14, 0
      %p76 = por %p74, %p75
      %p77 = scmp.ne.s32.totalorder %s69, %s71
      %p78 = scmp.eq.s32.totalorder %s19, 1
      %p79 = por %p77, %p78
      %p80 = scmp.ne.s32.totalorder %s71, %s72
      %p81 = scmp.eq.s32.totalorder %s19, 0
      %p82 = por %p80, %p81
      %p83 = scmp.ne.s32.totalorder %s71, %s72
      %p84 = scmp.eq.s32.totalorder %s20, 1
      %p85 = por %p83, %p84
      %p87 = scmp.ne.s32.totalorder %s72, %s86
      %p88 = scmp.eq.s32.totalorder %s20, 0
      %p89 = por %p87, %p88
      %s91 = sadd.s32 %s90, 1
      %p94 = scmp.eq.s32.totalorder %s14, 1
      %p95 = scmp.ne.s32.totalorder %s90, %s92
      %p96 = scmp.eq.s32.totalorder %s14, 0
      %p97 = por %p95, %p96
      %p98 = scmp.ne.s32.totalorder %s90, %s92
      %p99 = scmp.eq.s32.totalorder %s19, 1
      %p100 = por %p98, %p99
      %p101 = scmp.ne.s32.totalorder %s92, %s93
      %p102 = scmp.eq.s32.totalorder %s19, 0
      %p103 = por %p101, %p102
      %p104 = scmp.ne.s32.totalorder %s92, %s93
      %p105 = scmp.eq.s32.totalorder %s20, 1
      %p106 = por %p104, %p105
      %p108 = scmp.ne.s32.totalorder %s93, %s107
      %p109 = scmp.eq.s32.totalorder %s20, 0
      %p110 = por %p108, %p109
      %s112 = sadd.s32 %s111, 1
      %p115 = scmp.eq.s32.totalorder %s14, 1
      %p116 = scmp.ne.s32.totalorder %s111, %s113
      %p117 = scmp.eq.s32.totalorder %s14, 0
      %p118 = por %p116, %p117
      %p119 = scmp.ne.s32.totalorder %s111, %s113
      %p120 = scmp.eq.s32.totalorder %s19, 1
      %p121 = por %p119, %p120
      %p122 = scmp.ne.s32.totalorder %s113, %s114
      %p123 = scmp.eq.s32.totalorder %s19, 0
      %p124 = por %p122, %p123
      %p125 = scmp.ne.s32.totalorder %s113, %s114
      %p126 = scmp.eq.s32.totalorder %s20, 1
      %p127 = por %p125, %p126
      %p129 = scmp.ne.s32.totalorder %s114, %s128
      %p130 = scmp.eq.s32.totalorder %s20, 0
      %p131 = por %p129, %p130
      %s132 = ssub.s32 %s14, %s21
      %p133 = scmp.eq.s32.totalorder %s132, 0
      %s135 = sadd.s32 %s134, 1
      %s136 = scalar_select %p133, %s134, %s135
      %p139 = pneg %p133
      %p140 = scmp.eq.s32.totalorder %s14, 1
      %p141 = por %p139, %p140
      %p142 = scmp.ne.s32.totalorder %s134, %s137
      %p143 = scmp.eq.s32.totalorder %s14, 0
      %p144 = por %p142, %p143
      %p145 = scmp.ne.s32.totalorder %s134, %s137
      %p146 = scmp.eq.s32.totalorder %s19, 1
      %p147 = por %p145, %p146
      %p148 = scmp.ne.s32.totalorder %s137, %s138
      %p149 = scmp.eq.s32.totalorder %s19, 0
      %p150 = por %p148, %p149
      %p151 = scmp.ne.s32.totalorder %s137, %s138
      %p152 = scmp.eq.s32.totalorder %s20, 1
      %p153 = por %p151, %p152
      %p155 = scmp.ne.s32.totalorder %s138, %s154
      %p156 = scmp.eq.s32.totalorder %s20, 0
      %p157 = por %p155, %p156
      %p158 = scmp.le.s32.totalorder 1, %s14
      %p159 = scmp.lt.s32.totalorder %s14, 3
      %p160 = pnand %p158, %p159
      %p161 = pneg %p160
      // Predicated region
      $region9: #{tpu_custom_call.1} parent=5 // pred_check
        _
      $region10: #{tpu_custom_call.1} parent=5 // pred_check_branch
        %163 = sbr.rel (%p160) target = $region12
      $region11: #{tpu_custom_call.1} parent=5 // pred_region
        %s164 = ssub.s32 %s14, 1
        // Predicated region
        $region13: #{tpu_custom_call.1} parent=11 // pred_check
          %p165 = pneg %p61
        $region14: #{tpu_custom_call.1} parent=11 // pred_check_branch
          %167 = sbr.rel (%p165) target = $region16
        $region15: #{tpu_custom_call.1} parent=11 // pred_region
          _
        $region16: #{tpu_custom_call.1} parent=11 // pred_fallthru
          _
        // Predicated region
        $region17: #{tpu_custom_call.1} parent=11 // pred_check
          %p168 = pneg %p82
        $region18: #{tpu_custom_call.1} parent=11 // pred_check_branch
          %170 = sbr.rel (%p168) target = $region20
        $region19: #{tpu_custom_call.1} parent=11 // pred_region
          _
        $region20: #{tpu_custom_call.1} parent=11 // pred_fallthru
          _
        // Predicated region
        $region21: #{tpu_custom_call.1} parent=11 // pred_check
          %p171 = pneg %p103
        $region22: #{tpu_custom_call.1} parent=11 // pred_check_branch
          %173 = sbr.rel (%p171) target = $region24
        $region23: #{tpu_custom_call.1} parent=11 // pred_region
          _
        $region24: #{tpu_custom_call.1} parent=11 // pred_fallthru
          _
        // Predicated region
        $region25: #{tpu_custom_call.1} parent=11 // pred_check
          %p174 = pneg %p124
        $region26: #{tpu_custom_call.1} parent=11 // pred_check_branch
          %176 = sbr.rel (%p174) target = $region28
        $region27: #{tpu_custom_call.1} parent=11 // pred_region
          _
        $region28: #{tpu_custom_call.1} parent=11 // pred_fallthru
          _
      $region12: #{tpu_custom_call.1} parent=5 // pred_fallthru
        _
      %p177 = scmp.lt.s32.totalorder %s14, 2
      // Predicated region
      $region29: #{tpu_custom_call.1} parent=5 // pred_check
        %p178 = pneg %p177
      $region30: #{tpu_custom_call.1} parent=5 // pred_check_branch
        %180 = sbr.rel (%p178) target = $region32
      $region31: #{tpu_custom_call.1} parent=5 // pred_region
        // Predicated region
        $region33: #{tpu_custom_call.1} parent=31 // pred_check
          %p181 = pneg %p34
        $region34: #{tpu_custom_call.1} parent=31 // pred_check_branch
          %183 = sbr.rel (%p181) target = $region36
        $region35: #{tpu_custom_call.1} parent=31 // pred_region
          %s184 = smul.u32 2, %s14
          %p185 = scmp.lt.s32.totalorder %s184, 3
          %s186 = scalar_select %p185, %s184, 3
          %s187 = smul.addr %s186, 4
          %s188 = scalar_lea.vmem %s0, %s187
          %s189 = smul.u32 2, %s14
        $region36: #{tpu_custom_call.1} parent=31 // pred_fallthru
          _
      $region32: #{tpu_custom_call.1} parent=5 // pred_fallthru
        _
      %p190 = scmp.le.s32.totalorder 1, %s14
      %p191 = scmp.lt.s32.totalorder %s14, 3
      %p192 = pnand %p190, %p191
      %p193 = pneg %p192
      // Predicated region
      $region37: #{tpu_custom_call.1} parent=5 // pred_check
        _
      $region38: #{tpu_custom_call.1} parent=5 // pred_check_branch
        %195 = sbr.rel (%p192) target = $region40
      $region39: #{tpu_custom_call.1} parent=5 // pred_region
        %s196 = ssub.s32 %s14, 1
        %s197 = smul.u32 2, %s19
        %p198 = scmp.lt.s32.totalorder %s197, 3
        %s199 = scalar_select %p198, %s197, 3
        %s200 = smul.addr %s199, 4
        %s201 = scalar_lea.vmem %s0, %s200
        %p202 = pneg %p40
        %p203 = pneg %p37
        %p204 = pneg %p61
        %p205 = pneg %p58
        %p206 = pneg %p82
        %p207 = pneg %p79
        %p208 = pneg %p103
        %p209 = pneg %p100
        %p210 = pneg %p124
        %p211 = pneg %p121
        %p212 = pneg %p150
        %p213 = pneg %p147
        %s214 = sand.u32 %s137, 1
        %s215 = scalar_lea.sflag [#allocation3], %s214
        %s216 = sand.u32 %s137, 1
        %s217 = smul.addr %s216, 4
        %s218 = scalar_lea.vmem [#allocation2], %s217
        %s219 = smul.u32 2, %s19
        %p220 = scmp.lt.s32.totalorder %s219, 3
        %s221 = scalar_select %p220, %s219, 3
        %s222 = smul.addr %s221, 4
        %s223 = scalar_lea.vmem %s0, %s222
        %s224 = smul.u32 2, %s19
        %s225 = smul.u32 2, %s19
        %v226 = vld [vmem:[%s223] sm:$0xff]
        %v227 = vld [vmem:[%s1] sm:$0xff]
        %v228 = vld [vmem:[%s2] sm:$0xff]
        %230 = vset.pattern.permute.xlu0 0
        %231 = vperm.xlu0 %230, %v228
        %v232 = vpop.permute.xlu0 %231
        %v235 = vcombine.high %v226, %v226
        %vm236 = vcmask 31744
        %v238 = vsel %vm236, %v227, 0
        %vm240 = vcmask 1043456
        %v241 = vsel %vm240, %v226, 0
        %v243 = vsel %vm240, %v235, 0
        %245 = vmatprep.subr.mxu0 %v243
        %246 = vmatpush1.msra.mxu0 %v241
        %247 = vmatprep.subr.mxu0 0.0
        %248 = vmatpush1.msra.mxu0 0.0
        %249 = vmatprep.subr.mxu0 0.0
        %250 = vmatpush1.msra.mxu0 0.0
        %251 = vmatprep.subr.mxu0 0.0
        %252 = vmatpush1.msra.mxu0 0.0
        %253 = vmatprep.subr.mxu0 0.0
        %254 = vmatpush1.msra.mxu0 0.0
        %255 = vmatprep.subr.mxu0 0.0
        %256 = vmatpush1.msra.mxu0 0.0
        %257 = vmatprep.subr.mxu0 0.0
        %258 = vmatpush1.msra.mxu0 0.0
        %259 = vmatprep.subr.mxu0 0.0
        %260 = vmatpush1.msra.mxu0 0.0
        %261 = vmatprep.subr.mxu0 0.0
        %262 = vmatpush1.msra.mxu0 0.0
        %263 = vmatprep.subr.mxu0 0.0
        %264 = vmatpush1.msra.mxu0 0.0
        %265 = vmatprep.subr.mxu0 0.0
        %266 = vmatpush1.msra.mxu0 0.0
        %267 = vmatprep.subr.mxu0 0.0
        %268 = vmatpush1.msra.mxu0 0.0
        %269 = vmatprep.subr.mxu0 0.0
        %270 = vmatpush1.msra.mxu0 0.0
        %271 = vmatprep.subr.mxu0 0.0
        %272 = vmatpush1.msra.mxu0 0.0
        %273 = vmatprep.subr.mxu0 0.0
        %274 = vmatpush1.msra.mxu0 0.0
        %275 = vmatprep.subr.mxu0 0.0
        %276 = vmatpush1.msra.mxu0 0.0
        %277 = vmatprep.subr.mxu0 0.0
        %278 = vmatpush1.msra.mxu0 0.0
        %279 = vmatprep.subr.mxu0 0.0
        %280 = vmatpush1.msra.mxu0 0.0
        %281 = vmatprep.subr.mxu0 0.0
        %282 = vmatpush1.msra.mxu0 0.0
        %283 = vmatprep.subr.mxu0 0.0
        %284 = vmatpush1.msra.mxu0 0.0
        %285 = vmatprep.subr.mxu0 0.0
        %286 = vmatpush1.msra.mxu0 0.0
        %287 = vmatprep.subr.mxu0 0.0
        %288 = vmatpush1.msra.mxu0 0.0
        %289 = vmatprep.subr.mxu0 0.0
        %290 = vmatpush1.msra.mxu0 0.0
        %291 = vmatprep.subr.mxu0 0.0
        %292 = vmatpush1.msra.mxu0 0.0
        %293 = vmatprep.subr.mxu0 0.0
        %294 = vmatpush1.msra.mxu0 0.0
        %295 = vmatprep.subr.mxu0 0.0
        %296 = vmatpush1.msra.mxu0 0.0
        %297 = vmatprep.subr.mxu0 0.0
        %298 = vmatpush1.msra.mxu0 0.0
        %299 = vmatprep.subr.mxu0 0.0
        %300 = vmatpush1.msra.mxu0 0.0
        %301 = vmatprep.subr.mxu0 0.0
        %302 = vmatpush1.msra.mxu0 0.0
        %303 = vmatprep.subr.mxu0 0.0
        %304 = vmatpush1.msra.mxu0 0.0
        %305 = vmatprep.subr.mxu0 0.0
        %306 = vmatpush1.msra.mxu0 0.0
        %307 = vmatprep.subr.mxu0 0.0
        %308 = vmatpush1.msra.mxu0 0.0
        %309 = vmatprep.mubr.f32.mxu0 0.0
        %310 = vmatmul.mubr.f32.gmra.mrb[0].mxu0 %v238
        %v311 = vpop.f32.mrb[0].mxu0
        %v312 = vadd.f32 %v232, %v311
        %v313 = vpop.f32.mrb[0].mxu0
        %v314 = vadd.f32 %v232, %v313
        %315 = vdwg.mxu0
        %v316 = vmax.f32 %v312, 0.0
        %v317 = vmax.f32 %v314, 0.0
        %v318 = vld [vmem:[%s3] sm:$0x3]
        %v319 = vld [vmem:[%s4] sm:$0x3]
        %321 = vset.pattern.permute.xlu0 0
        %322 = vperm.xlu0 %321, %v319
        %v323 = vpop.permute.xlu0 %322
        %vm325 = vcmask 64512
        %v327 = vsel %vm325, %v318, 0
        %329 = vmatprep.subr.mxu0 %v317
        %330 = vmatpush1.msra.mxu0 %v316
        %331 = vmatprep.subr.mxu0 0.0
        %332 = vmatpush1.msra.mxu0 0.0
        %333 = vmatprep.subr.mxu0 0.0
        %334 = vmatpush1.msra.mxu0 0.0
        %335 = vmatprep.subr.mxu0 0.0
        %336 = vmatpush1.msra.mxu0 0.0
        %337 = vmatprep.subr.mxu0 0.0
        %338 = vmatpush1.msra.mxu0 0.0
        %339 = vmatprep.subr.mxu0 0.0
        %340 = vmatpush1.msra.mxu0 0.0
        %341 = vmatprep.subr.mxu0 0.0
        %342 = vmatpush1.msra.mxu0 0.0
        %343 = vmatprep.subr.mxu0 0.0
        %344 = vmatpush1.msra.mxu0 0.0
        %345 = vmatprep.subr.mxu0 0.0
        %346 = vmatpush1.msra.mxu0 0.0
        %347 = vmatprep.subr.mxu0 0.0
        %348 = vmatpush1.msra.mxu0 0.0
        %349 = vmatprep.subr.mxu0 0.0
        %350 = vmatpush1.msra.mxu0 0.0
        %351 = vmatprep.subr.mxu0 0.0
        %352 = vmatpush1.msra.mxu0 0.0
        %353 = vmatprep.subr.mxu0 0.0
        %354 = vmatpush1.msra.mxu0 0.0
        %355 = vmatprep.subr.mxu0 0.0
        %356 = vmatpush1.msra.mxu0 0.0
        %357 = vmatprep.subr.mxu0 0.0
        %358 = vmatpush1.msra.mxu0 0.0
        %359 = vmatprep.subr.mxu0 0.0
        %360 = vmatpush1.msra.mxu0 0.0
        %361 = vmatprep.subr.mxu0 0.0
        %362 = vmatpush1.msra.mxu0 0.0
        %363 = vmatprep.subr.mxu0 0.0
        %364 = vmatpush1.msra.mxu0 0.0
        %365 = vmatprep.subr.mxu0 0.0
        %366 = vmatpush1.msra.mxu0 0.0
        %367 = vmatprep.subr.mxu0 0.0
        %368 = vmatpush1.msra.mxu0 0.0
        %369 = vmatprep.subr.mxu0 0.0
        %370 = vmatpush1.msra.mxu0 0.0
        %371 = vmatprep.subr.mxu0 0.0
        %372 = vmatpush1.msra.mxu0 0.0
        %373 = vmatprep.subr.mxu0 0.0
        %374 = vmatpush1.msra.mxu0 0.0
        %375 = vmatprep.subr.mxu0 0.0
        %376 = vmatpush1.msra.mxu0 0.0
        %377 = vmatprep.subr.mxu0 0.0
        %378 = vmatpush1.msra.mxu0 0.0
        %379 = vmatprep.subr.mxu0 0.0
        %380 = vmatpush1.msra.mxu0 0.0
        %381 = vmatprep.subr.mxu0 0.0
        %382 = vmatpush1.msra.mxu0 0.0
        %383 = vmatprep.subr.mxu0 0.0
        %384 = vmatpush1.msra.mxu0 0.0
        %385 = vmatprep.subr.mxu0 0.0
        %386 = vmatpush1.msra.mxu0 0.0
        %387 = vmatprep.subr.mxu0 0.0
        %388 = vmatpush1.msra.mxu0 0.0
        %389 = vmatprep.subr.mxu0 0.0
        %390 = vmatpush1.msra.mxu0 0.0
        %391 = vmatprep.subr.mxu0 0.0
        %392 = vmatpush1.msra.mxu0 0.0
        %393 = vmatprep.mubr.f32.mxu0 0.0
        %394 = vmatmul.mubr.f32.gmra.mrb[0].mxu0 %v327
        %v395 = vpop.f32.mrb[0].mxu0
        %v396 = vadd.f32 %v323, %v395
        %v397 = vpop.f32.mrb[0].mxu0
        %v398 = vadd.f32 %v323, %v397
        %399 = vdwg.mxu0
        %v402 = vcombine.low %v396, %v398
        %v404 = vunpack.c.l.s4 1983009808
        %v405 = vunpack.c.0.s8 %v404
        %v406 = vlaneseq
        %v407 = vshrl.u32 %v406, 7
        %v408 = vsub.s32 %v405, %v407
        %v409 = vrot.slane %v402, %v408
        %411 = vst [vmem:[%s218] sm:$0xf] %v409
        %s412 = sand.u32 %s137, 1
        %s413 = scalar_lea.sflag [#allocation3], %s412
        %s414 = sand.u32 %s137, 1
        %s415 = smul.addr %s414, 4
        %s416 = scalar_lea.vmem [#allocation2], %s415
        // Predicated region
        $region41: #{tpu_custom_call.1} parent=39 // pred_check
          %p417 = pneg %p147
        $region42: #{tpu_custom_call.1} parent=39 // pred_check_branch
          %419 = sbr.rel (%p417) target = $region44
        $region43: #{tpu_custom_call.1} parent=39 // pred_region
          %s420 = smul.u32 2, %s19
          %s422 = ssub.s32 64, 64
          %423 = vsyncadd %s413, %s422
          %s424 = smul.addr %s420, 32
          %s425 = scalar_lea.hbm %s5, %s424
          %s427 = sshll.u32 %s416, 4
          %s428 = int_to_ptr.vmem [resolvable:$true] %s427
          %430 = dma.vmem_to_hbm [thread:$0]  %s428, 64, %s425, %s413
        $region44: #{tpu_custom_call.1} parent=39 // pred_fallthru
          _
      $region40: #{tpu_custom_call.1} parent=5 // pred_fallthru
        _
      %p431 = scmp.le.s32.totalorder 2, %s14
      // Predicated region
      $region45: #{tpu_custom_call.1} parent=5 // pred_check
        %p432 = pneg %p431
      $region46: #{tpu_custom_call.1} parent=5 // pred_check_branch
        %434 = sbr.rel (%p432) target = $region48
      $region47: #{tpu_custom_call.1} parent=5 // pred_region
        %s435 = ssub.s32 %s14, 2
        // Predicated region
        $region49: #{tpu_custom_call.1} parent=47 // pred_check
          %p436 = pneg %p153
        $region50: #{tpu_custom_call.1} parent=47 // pred_check_branch
          %438 = sbr.rel (%p436) target = $region52
        $region51: #{tpu_custom_call.1} parent=47 // pred_region
          %s439 = sand.u32 %s138, 1
          %s440 = scalar_lea.sflag [#allocation3], %s439
          %s441 = sand.u32 %s138, 1
          %s442 = smul.addr %s441, 4
          %s443 = scalar_lea.vmem [#allocation2], %s442
          %444 = dma.done %s440, 64
        $region52: #{tpu_custom_call.1} parent=47 // pred_fallthru
          _
      $region48: #{tpu_custom_call.1} parent=5 // pred_fallthru
        _
    $region6: #{tpu_custom_call.1} parent=1 // loop_footer
      %s18 = sadd.s32 1, %s14
    $region7: #{tpu_custom_call.1} parent=1 // loop_footer_branch
      %13 = sbr.rel target = $region3
    $region8: #{tpu_custom_call.1} parent=1 // loop_exit
      _
    %445 = vsyncpa [#allocation3], 1
    %s446 = scalar_lea.sflag [#allocation3], 1
    %447 = vsyncpa %s446, 1

</llo_original>
